<compile_context>
chip_gen: v5e
topology: v5e:2x2
jax: 0.10.0
libtpu: 0.0.40
codegen_flags: <defaults>
</compile_context>

<pallas_src>
import jax
import jax.numpy as jnp
from jax import lax
from jax.experimental import pallas as pl
from jax.experimental.pallas import tpu as pltpu

PAD = 128          # lane padding for the hidden feature dims (16, 8 -> 128)
CONST_LANE = 8     # lane of the fused 16->8 activation pinned to 1.0 (bias trick)


# All nn.Linear layers of the module, in forward order: (fan_in, fan_out).
def _all_linear_dims(input_dim):
    return [
        (input_dim, 16),                     # 0: features[0]  Linear(input_dim,16)
        (16, 16), (16, 16), (16, 16),        # 1,2,3: SelfAttention(16) query/key/value
        (16, 8),                             # 4: features[3]  Linear(16,8)
        (8, 8), (8, 8), (8, 8),              # 5,6,7: SelfAttention(8) query/key/value
        (8, 1),                              # 8: last_layer   Linear(8,1)
    ]


def _round_up(x, m):
    return ((x + m - 1) // m) * m


def pack_params(Ws, bs, input_dim):
    """Pack raw PyTorch-layout weights into the 3-matmul fused kernel layout."""
    D = input_dim
    Din = max(8, _round_up(D, 8))
    # TODO(synk): K-tile the first matmul for input_dim > 128 (not needed here).
    assert Din <= PAD, "input_dim > 128 not supported by this kernel"

    # Layer 0: Linear(input_dim, 16)   (x @ W form)
    W0 = jnp.zeros((Din, PAD), jnp.float32).at[:D, :16].set(Ws[0].T)

    # Fused: SelfAttention(16).value + Linear(16, 8)
    A1 = (jnp.eye(16, dtype=jnp.float32) + Ws[3].T) @ Ws[4].T          # (16, 8)
    c1 = bs[3] @ Ws[4].T + bs[4]                                       # (8,)
    W1 = jnp.zeros((PAD, PAD), jnp.float32).at[:16, :8].set(A1)

    # Fused: SelfAttention(8).value + Linear(8, 1), stored transposed (row 0)
    A2 = (jnp.eye(8, dtype=jnp.float32) + Ws[7].T) @ Ws[8].T           # (8, 1)
    c2 = bs[7] @ Ws[8].T + bs[8]                                       # (1,)
    W2T = jnp.zeros((8, PAD), jnp.float32).at[0, :8].set(A2[:, 0])
    W2T = W2T.at[0, CONST_LANE].set(c2[0])        # last-layer bias via constant lane

    b01 = jnp.zeros((2, PAD), jnp.float32)
    b01 = b01.at[0, :16].set(bs[0])               # layer-0 bias
    b01 = b01.at[1, :8].set(c1)                   # fused 16->8 bias
    b01 = b01.at[1, CONST_LANE].set(1.0)          # pins h[:, CONST_LANE] = 1.0
    return W0, W1, W2T, b01


def make_params(key, input_dim):
    """PyTorch-default-style init. Returns packed kernel params + raw params."""
    dims = _all_linear_dims(input_dim)
    Ws, bs = [], []
    for fi, fo in dims:
        key, k1, k2 = jax.random.split(key, 3)
        bound = 1.0 / (fi ** 0.5)
        Ws.append(jax.random.uniform(k1, (fo, fi), jnp.float32, -bound, bound))
        bs.append(jax.random.uniform(k2, (fo,), jnp.float32, -bound, bound))
    return pack_params(Ws, bs, input_dim), Ws, bs


def disc_kernel(x_ref, w0_ref, w1_ref, w2t_ref, b_ref, out_ref):
    """Whole Discriminator forward on one (TB, Din) activation tile."""
    b01 = b_ref[...]                                             # (2, PAD)

    # Linear(input_dim, 16) + LeakyReLU(0.2)         (padded to 128 lanes)
    h = jnp.dot(x_ref[...], w0_ref[...],
                preferred_element_type=jnp.float32) + b01[0]
    h = jnp.where(h >= 0, h, 0.2 * h)

    # SelfAttention(16) folded into Linear(16, 8), + LeakyReLU(0.2)
    # (lane CONST_LANE becomes exactly 1.0: pre-act 0 + bias 1, leaky(1)=1)
    h = jnp.dot(h, w1_ref[...],
                preferred_element_type=jnp.float32) + b01[1]
    h = jnp.where(h >= 0, h, 0.2 * h)

    # SelfAttention(8) folded into Linear(8, 1), computed transposed so the
    # output is lane-dense; the last-layer bias rides on the constant lane.
    vt = lax.dot_general(w2t_ref[...], h,
                         dimension_numbers=(((1,), (1,)), ((), ())),
                         preferred_element_type=jnp.float32)     # (8, TB)

    out_ref[...] = 1.0 / (1.0 + jnp.exp(-vt))                    # Sigmoid; row 0 is valid


def discriminator_forward(x, params, tb_cap=2048):
    W0, W1, W2T, b01 = params
    B, D = x.shape
    Din = W0.shape[0]
    assert D <= Din, "input feature dim does not match packed parameters"

    # Batch tile: multiple of 128 (lane-dense output), capped, and no larger
    # than ceil(B/2) rounded up so the grid has >=2 steps whenever B > 128
    # (keeps both v7x TensorCores busy with the "parallel" batch axis).
    half = -(-B // 2)
    TB = min(tb_cap, max(128, _round_up(half, 128)))
    Bp = _round_up(B, TB)
    n_tiles = Bp // TB

    xp = x.astype(jnp.float32)
    if Bp > B or Din > D:
        xp = jnp.zeros((Bp, Din), jnp.float32).at[:B, :D].set(xp)

    out = pl.pallas_call(
        disc_kernel,
        out_shape=jax.ShapeDtypeStruct((8, Bp), jnp.float32),
        grid_spec=pltpu.PrefetchScalarGridSpec(
            num_scalar_prefetch=0,
            grid=(n_tiles,),
            in_specs=[
                pl.BlockSpec((TB, Din), lambda b: (b, 0)),   # activations: per-tile
                pl.BlockSpec((Din, PAD), lambda b: (0, 0)),  # layer-0 weight (resident)
                pl.BlockSpec((PAD, PAD), lambda b: (0, 0)),  # fused 16->8 weight
                pl.BlockSpec((8, PAD), lambda b: (0, 0)),    # fused 8->1 weight (transposed)
                pl.BlockSpec((2, PAD), lambda b: (0, 0)),    # biases
            ],
            out_specs=pl.BlockSpec((8, TB), lambda b: (0, b)),  # lane-dense output
        ),
        compiler_params=pltpu.CompilerParams(
            dimension_semantics=("parallel",)),              # batch axis -> both TCs on v7x
    )(xp, W0, W1, W2T, b01)

    return out[0, :B][:, None]                                # validity, shape (B, 1)


def discriminator_reference(x, Ws, bs):
    """Pure-JAX reference mirroring the PyTorch forward exactly (incl. Q/K/softmax)."""

    def self_attention(h, qi, d):
        q = h @ Ws[qi].T + bs[qi]
        k = h @ Ws[qi + 1].T + bs[qi + 1]
        v = h @ Ws[qi + 2].T + bs[qi + 2]
        s = jnp.sum(q * k, axis=-1, keepdims=True) / jnp.sqrt(float(d))
        w = jax.nn.softmax(s[:, :, None], axis=-1)[:, :, 0]    # size-1 axis -> 1.0
        return h + w * v

    h = x.astype(jnp.float32)
    h = h @ Ws[0].T + bs[0]
    h = jnp.where(h >= 0, h, 0.2 * h)
    h = self_attention(h, 1, 16)
    h = h @ Ws[4].T + bs[4]
    h = jnp.where(h >= 0, h, 0.2 * h)
    h = self_attention(h, 5, 8)
    v = h @ Ws[8].T + bs[8]
    return jax.nn.sigmoid(v)


if __name__ == "__main__":
    input_dim, batch = 32, 4
    key = jax.random.PRNGKey(0)
    kx, kp = jax.random.split(key)

    params, Ws, bs = make_params(kp, input_dim)
    x = jax.random.normal(kx, (batch, input_dim), jnp.float32)

    validity = jax.block_until_ready(discriminator_forward(x, params))
    ref = discriminator_reference(x, Ws, bs)
    assert validity.shape == (batch, 1)
    assert jnp.allclose(validity, ref, atol=1e-5, rtol=1e-5), "mismatch vs JAX reference"

    # Exercise the multi-tile path (>=2 grid steps over the batch axis).
    xb = jax.random.normal(jax.random.PRNGKey(1), (260, input_dim), jnp.float32)
    vb = jax.block_until_ready(discriminator_forward(xb, params))
    refb = discriminator_reference(xb, Ws, bs)
    assert vb.shape == (260, 1)
    assert jnp.allclose(vb, refb, atol=1e-5, rtol=1e-5), "batched mismatch vs JAX reference"

    print("KERNEL_OK")
</pallas_src>

<mosaic_0001>
module attributes {stable_mosaic.version = 11 : i64} {
  func.func @disc_kernel(%arg0: i32, %arg1: memref<128x32xf32, #tpu.memory_space<vmem>>, %arg2: memref<32x128xf32, #tpu.memory_space<vmem>>, %arg3: memref<128x128xf32, #tpu.memory_space<vmem>>, %arg4: memref<8x128xf32, #tpu.memory_space<vmem>>, %arg5: memref<2x128xf32, #tpu.memory_space<vmem>>, %arg6: memref<8x128xf32, #tpu.memory_space<vmem>>) attributes {dimension_semantics = [#tpu.dimension_semantics<parallel>], iteration_bounds = array<i64: 1>, scalar_prefetch = 0 : i64, scratch_operands = 0 : i64, tpu.core_type = #tpu.core_type<tc>, window_params = [{transform_indices = @transform_0, window_bounds = array<i64: 128, 32>}, {pipeline_mode = #tpu.pipeline_mode<synchronous>, transform_indices = @transform_1, window_bounds = array<i64: 32, 128>}, {pipeline_mode = #tpu.pipeline_mode<synchronous>, transform_indices = @transform_2, window_bounds = array<i64: 128, 128>}, {pipeline_mode = #tpu.pipeline_mode<synchronous>, transform_indices = @transform_3, window_bounds = array<i64: 8, 128>}, {pipeline_mode = #tpu.pipeline_mode<synchronous>, transform_indices = @transform_4, window_bounds = array<i64: 2, 128>}, {transform_indices = @transform_5, window_bounds = array<i64: 8, 128>}]} {
    %c0 = arith.constant 0 : index
    %c0_0 = arith.constant 0 : index
    %0 = vector.load %arg5[%c0, %c0_0] : memref<2x128xf32, #tpu.memory_space<vmem>>, vector<2x128xf32>
    %c0_1 = arith.constant 0 : index
    %c0_2 = arith.constant 0 : index
    %1 = vector.load %arg1[%c0_1, %c0_2] : memref<128x32xf32, #tpu.memory_space<vmem>>, vector<128x32xf32>
    %c0_3 = arith.constant 0 : index
    %c0_4 = arith.constant 0 : index
    %2 = vector.load %arg2[%c0_3, %c0_4] : memref<32x128xf32, #tpu.memory_space<vmem>>, vector<32x128xf32>
    %cst = arith.constant dense<0.000000e+00> : vector<128x128xf32>
    %3 = tpu.matmul %1, %2, %cst {dimension_numbers = #tpu.dot_dimension_numbers<[1], [0], [0], [1], [0, 0, 1, 1], [], []>} : vector<128x32xf32>, vector<32x128xf32>, vector<128x128xf32> -> vector<128x128xf32>
    %4 = vector.extract_strided_slice %0 {offsets = [0, 0], sizes = [1, 128], strides = [1, 1]} : vector<2x128xf32> to vector<1x128xf32>
    %5 = vector.shape_cast %4 : vector<1x128xf32> to vector<128xf32>
    %6 = vector.shape_cast %5 : vector<128xf32> to vector<1x128xf32>
    %7 = vector.broadcast %6 : vector<1x128xf32> to vector<128x128xf32>
    %8 = arith.addf %3, %7 : vector<128x128xf32>
    %cst_5 = arith.constant 0.000000e+00 : f32
    %9 = vector.broadcast %cst_5 : f32 to vector<128x128xf32>
    %10 = arith.cmpf oge, %8, %9 : vector<128x128xf32>
    %cst_6 = arith.constant 2.000000e-01 : f32
    %11 = vector.broadcast %cst_6 : f32 to vector<128x128xf32>
    %12 = arith.mulf %11, %8 : vector<128x128xf32>
    %13 = arith.select %10, %8, %12 : vector<128x128xi1>, vector<128x128xf32>
    %c0_7 = arith.constant 0 : index
    %c0_8 = arith.constant 0 : index
    %14 = vector.load %arg3[%c0_7, %c0_8] : memref<128x128xf32, #tpu.memory_space<vmem>>, vector<128x128xf32>
    %cst_9 = arith.constant dense<0.000000e+00> : vector<128x128xf32>
    %15 = tpu.matmul %13, %14, %cst_9 {dimension_numbers = #tpu.dot_dimension_numbers<[1], [0], [0], [1], [0, 0, 1, 1], [], []>} : vector<128x128xf32>, vector<128x128xf32>, vector<128x128xf32> -> vector<128x128xf32>
    %16 = vector.extract_strided_slice %0 {offsets = [1, 0], sizes = [1, 128], strides = [1, 1]} : vector<2x128xf32> to vector<1x128xf32>
    %17 = vector.shape_cast %16 : vector<1x128xf32> to vector<128xf32>
    %18 = vector.shape_cast %17 : vector<128xf32> to vector<1x128xf32>
    %19 = vector.broadcast %18 : vector<1x128xf32> to vector<128x128xf32>
    %20 = arith.addf %15, %19 : vector<128x128xf32>
    %cst_10 = arith.constant 0.000000e+00 : f32
    %21 = vector.broadcast %cst_10 : f32 to vector<128x128xf32>
    %22 = arith.cmpf oge, %20, %21 : vector<128x128xf32>
    %cst_11 = arith.constant 2.000000e-01 : f32
    %23 = vector.broadcast %cst_11 : f32 to vector<128x128xf32>
    %24 = arith.mulf %23, %20 : vector<128x128xf32>
    %25 = arith.select %22, %20, %24 : vector<128x128xi1>, vector<128x128xf32>
    %c0_12 = arith.constant 0 : index
    %c0_13 = arith.constant 0 : index
    %26 = vector.load %arg4[%c0_12, %c0_13] : memref<8x128xf32, #tpu.memory_space<vmem>>, vector<8x128xf32>
    %cst_14 = arith.constant dense<0.000000e+00> : vector<8x128xf32>
    %27 = tpu.matmul %26, %25, %cst_14 {dimension_numbers = #tpu.dot_dimension_numbers<[1], [1], [0], [0], [0, 0, 1, 0], [], []>} : vector<8x128xf32>, vector<128x128xf32>, vector<8x128xf32> -> vector<8x128xf32>
    %cst_15 = arith.constant 0.000000e+00 : f32
    %28 = vector.broadcast %cst_15 : f32 to vector<8x128xf32>
    %29 = arith.subf %28, %27 : vector<8x128xf32>
    %30 = math.exp %29 : vector<8x128xf32>
    %cst_16 = arith.constant 1.000000e+00 : f32
    %31 = vector.broadcast %cst_16 : f32 to vector<8x128xf32>
    %32 = arith.addf %31, %30 : vector<8x128xf32>
    %cst_17 = arith.constant 1.000000e+00 : f32
    %33 = vector.broadcast %cst_17 : f32 to vector<8x128xf32>
    %34 = arith.divf %33, %32 : vector<8x128xf32>
    %c0_18 = arith.constant 0 : index
    %c0_19 = arith.constant 0 : index
    %35 = vector.load %arg6[%c0_18, %c0_19] : memref<8x128xf32, #tpu.memory_space<vmem>>, vector<8x128xf32>
    tpu.vector_store %arg6[%c0_18, %c0_19], %34 {strides = array<i32>} : memref<8x128xf32, #tpu.memory_space<vmem>>, vector<8x128xf32>,
    return
  }
  func.func @transform_0(%arg0: i32) -> (i32, i32) {
    %c0_i32 = arith.constant 0 : i32
    %c0_i32_0 = arith.constant 0 : i32
    return %arg0, %c0_i32 : i32, i32
  }
  func.func @transform_1(%arg0: i32) -> (i32, i32) {
    %c0_i32 = arith.constant 0 : i32
    %c0_i32_0 = arith.constant 0 : i32
    %c0_i32_1 = arith.constant 0 : i32
    return %c0_i32, %c0_i32_0 : i32, i32
  }
  func.func @transform_2(%arg0: i32) -> (i32, i32) {
    %c0_i32 = arith.constant 0 : i32
    %c0_i32_0 = arith.constant 0 : i32
    %c0_i32_1 = arith.constant 0 : i32
    return %c0_i32, %c0_i32_0 : i32, i32
  }
  func.func @transform_3(%arg0: i32) -> (i32, i32) {
    %c0_i32 = arith.constant 0 : i32
    %c0_i32_0 = arith.constant 0 : i32
    %c0_i32_1 = arith.constant 0 : i32
    return %c0_i32, %c0_i32_0 : i32, i32
  }
  func.func @transform_4(%arg0: i32) -> (i32, i32) {
    %c0_i32 = arith.constant 0 : i32
    %c0_i32_0 = arith.constant 0 : i32
    %c0_i32_1 = arith.constant 0 : i32
    return %c0_i32, %c0_i32_0 : i32, i32
  }
  func.func @transform_5(%arg0: i32) -> (i32, i32) {
    %c0_i32 = arith.constant 0 : i32
    %c0_i32_0 = arith.constant 0 : i32
    return %c0_i32, %arg0 : i32, i32
  }
}

</mosaic_0001>

<llo_original>
// kernel: tpu_custom_call.1
$region0: #{tpu_custom_call.1}
  #allocation0 [shape = 'u32[]', space=smem, size = 0x4, offset = 0x4, fixed_abs, tag = 'smem constant byte address 0x4 - core index']
  #allocation1 [shape = 'u32[72,128]{1,0:T(1,128)}', space=vmem, size = 0x9000, scoped, tag = 'internal scratch']
  %s0 = inlined_call_operand.vmem [shape: f32[128,32], index: 0, kind: input, shape index: {}]
  %s1 = inlined_call_operand.vmem [shape: f32[32,128], index: 1, kind: input, shape index: {}]
  %s2 = inlined_call_operand.vmem [shape: f32[128,128], index: 2, kind: input, shape index: {}]
  %s3 = inlined_call_operand.hbm [shape: f32[8,128], index: 3, kind: input, shape index: {}]
  %s4 = inlined_call_operand.vmem [shape: f32[2,128], index: 4, kind: input, shape index: {}]
  %s5 = inlined_call_operand.hbm [shape: f32[8,128], index: 5, kind: output, shape index: {}]
  %s6 = sld [smem:[#allocation0]]
  $region34: #{tpu_custom_call.1} parent=0
    _
  %s8 = ssub.s32 1, %s6
  %s9 = scalar_select 0, %s8, %s6
  $region1: #{tpu_custom_call.1} parent=0
    #allocation2 [shape = 'u8[4096]{0}', space=vmem, size = 0x1000, scoped, tag = 'input window, operand 3, single buffered']
    #allocation3 [shape = 's32[1]{0}', space=sflag, size = 0x4, scoped, tag = 'scoped memory for tpu_custom_call.1']
    #allocation4 [shape = 's32[1]{0}', space=sflag, size = 0x4, scoped, tag = 'scoped memory for tpu_custom_call.1']
    #allocation5 [shape = 'u8[4096]{0}', space=vmem, size = 0x1000, scoped, tag = 'output window, operand 0, single buffered']
    %10 = vsyncpa [#allocation3], 0
    %11 = vsyncpa [#allocation4], 0
    // Predicated region
    $region2: #{tpu_custom_call.1} parent=1 // pred_check
      _
    $region3: #{tpu_custom_call.1} parent=1 // pred_check_branch
      %13 = sbr.rel (0) target = $region5
    $region4: #{tpu_custom_call.1} parent=1 // pred_region
      _
    $region5: #{tpu_custom_call.1} parent=1 // pred_fallthru
      _
    // Predicated region
    $region6: #{tpu_custom_call.1} parent=1 // pred_check
      _
    $region7: #{tpu_custom_call.1} parent=1 // pred_check_branch
      %15 = sbr.rel (0) target = $region9
    $region8: #{tpu_custom_call.1} parent=1 // pred_region
      _
    $region9: #{tpu_custom_call.1} parent=1 // pred_fallthru
      _
    // Predicated region
    $region10: #{tpu_custom_call.1} parent=1 // pred_check
      _
    $region11: #{tpu_custom_call.1} parent=1 // pred_check_branch
      %17 = sbr.rel (0) target = $region13
    $region12: #{tpu_custom_call.1} parent=1 // pred_region
      _
    $region13: #{tpu_custom_call.1} parent=1 // pred_fallthru
      _
    // Predicated region
    $region14: #{tpu_custom_call.1} parent=1 // pred_check
      _
    $region15: #{tpu_custom_call.1} parent=1 // pred_check_branch
      %19 = sbr.rel (0) target = $region17
    $region16: #{tpu_custom_call.1} parent=1 // pred_region
      %21 = vsyncadd [#allocation3], 0
      %s23 = sshll.u32 %s3, 4
      %s24 = int_to_ptr.hbm [resolvable:$true] %s23
      %s25 = sshll.u32 [#allocation2], 4
      %s26 = int_to_ptr.vmem [resolvable:$true] %s25
      %28 = dma.hbm_to_vmem [thread:$0]  %s24, 128, %s26, [#allocation3]
    $region17: #{tpu_custom_call.1} parent=1 // pred_fallthru
      _
    // Predicated region
    $region18: #{tpu_custom_call.1} parent=1 // pred_check
      _
    $region19: #{tpu_custom_call.1} parent=1 // pred_check_branch
      %30 = sbr.rel (0) target = $region21
    $region20: #{tpu_custom_call.1} parent=1 // pred_region
      _
    $region21: #{tpu_custom_call.1} parent=1 // pred_fallthru
      _
    // Predicated region
    $region22: #{tpu_custom_call.1} parent=1 // pred_check
      _
    $region23: #{tpu_custom_call.1} parent=1 // pred_check_branch
      %32 = sbr.rel (0) target = $region25
    $region24: #{tpu_custom_call.1} parent=1 // pred_region
      %34 = dma.done [#allocation3], 128
    $region25: #{tpu_custom_call.1} parent=1 // pred_fallthru
      _
    %v35 = vld [vmem:[%s4] sm:$0x3]
    %v36 = vld [vmem:[%s0] sm:$0xff]
    %v37 = vld [vmem:[%s0 + $0x8] sm:$0xff]
    %v38 = vld [vmem:[%s0 + $0x10] sm:$0xff]
    %v39 = vld [vmem:[%s0 + $0x18] sm:$0xff]
    %v40 = vld [vmem:[%s0 + $0x20] sm:$0xff]
    %v41 = vld [vmem:[%s0 + $0x28] sm:$0xff]
    %v42 = vld [vmem:[%s0 + $0x30] sm:$0xff]
    %v43 = vld [vmem:[%s0 + $0x38] sm:$0xff]
    %v44 = vld [vmem:[%s0 + $0x40] sm:$0xff]
    %v45 = vld [vmem:[%s0 + $0x48] sm:$0xff]
    %v46 = vld [vmem:[%s0 + $0x50] sm:$0xff]
    %v47 = vld [vmem:[%s0 + $0x58] sm:$0xff]
    %v48 = vld [vmem:[%s0 + $0x60] sm:$0xff]
    %v49 = vld [vmem:[%s0 + $0x68] sm:$0xff]
    %v50 = vld [vmem:[%s0 + $0x70] sm:$0xff]
    %v51 = vld [vmem:[%s0 + $0x78] sm:$0xff]
    %v52 = vld [vmem:[%s1] sm:$0xff]
    %v53 = vld [vmem:[%s1 + $0x8] sm:$0xff]
    %v54 = vld [vmem:[%s1 + $0x10] sm:$0xff]
    %v55 = vld [vmem:[%s1 + $0x18] sm:$0xff]
    %v56 = vperm.slane %v35, 0
    %vm57 = vcmask 261120
    %v59 = vsel %vm57, %v36, 0
    %v62 = vsel %vm57, %v37, 0
    %v65 = vsel %vm57, %v38, 0
    %v68 = vsel %vm57, %v39, 0
    %v71 = vsel %vm57, %v40, 0
    %v74 = vsel %vm57, %v41, 0
    %v77 = vsel %vm57, %v42, 0
    %v80 = vsel %vm57, %v43, 0
    %v83 = vsel %vm57, %v44, 0
    %v86 = vsel %vm57, %v45, 0
    %v89 = vsel %vm57, %v46, 0
    %v92 = vsel %vm57, %v47, 0
    %v95 = vsel %vm57, %v48, 0
    %v98 = vsel %vm57, %v49, 0
    %v101 = vsel %vm57, %v50, 0
    %v104 = vsel %vm57, %v51, 0
    %106 = vmatpush.msra.mxu0 0.0
    %107 = vmatpush.msra.mxu0 0.0
    %108 = vmatpush.msra.mxu0 0.0
    %109 = vmatpush.msra.mxu0 0.0
    %110 = vmatpush.msra.mxu0 0.0
    %111 = vmatpush.msra.mxu0 0.0
    %112 = vmatpush.msra.mxu0 0.0
    %113 = vmatpush.msra.mxu0 0.0
    %114 = vmatpush.msra.mxu0 0.0
    %115 = vmatpush.msra.mxu0 0.0
    %116 = vmatpush.msra.mxu0 0.0
    %117 = vmatpush.msra.mxu0 0.0
    %118 = vmatpush.msra.mxu0 %v55
    %119 = vmatpush.msra.mxu0 %v54
    %120 = vmatpush.msra.mxu0 %v53
    %121 = vmatpush.msra.mxu0 %v52
    %122 = vmatmul.f32.gmra.mxu0 %v59
    %v123 = vpop.f32.mrf.mxu0
    %v124 = vadd.f32 %v56, %v123
    %125 = vmatmul.f32.gmra.mxu0 %v62
    %v126 = vpop.f32.mrf.mxu0
    %v127 = vadd.f32 %v56, %v126
    %128 = vmatmul.f32.gmra.mxu0 %v65
    %v129 = vpop.f32.mrf.mxu0
    %v130 = vadd.f32 %v56, %v129
    %131 = vmatmul.f32.gmra.mxu0 %v68
    %v132 = vpop.f32.mrf.mxu0
    %v133 = vadd.f32 %v56, %v132
    %134 = vmatmul.f32.gmra.mxu0 %v71
    %v135 = vpop.f32.mrf.mxu0
    %v136 = vadd.f32 %v56, %v135
    %137 = vmatmul.f32.gmra.mxu0 %v74
    %v138 = vpop.f32.mrf.mxu0
    %v139 = vadd.f32 %v56, %v138
    %140 = vmatmul.f32.gmra.mxu0 %v77
    %v141 = vpop.f32.mrf.mxu0
    %v142 = vadd.f32 %v56, %v141
    %143 = vmatmul.f32.gmra.mxu0 %v80
    %v144 = vpop.f32.mrf.mxu0
    %v145 = vadd.f32 %v56, %v144
    %146 = vmatmul.f32.gmra.mxu0 %v83
    %v147 = vpop.f32.mrf.mxu0
    %v148 = vadd.f32 %v56, %v147
    %149 = vmatmul.f32.gmra.mxu0 %v86
    %v150 = vpop.f32.mrf.mxu0
    %v151 = vadd.f32 %v56, %v150
    %152 = vmatmul.f32.gmra.mxu0 %v89
    %v153 = vpop.f32.mrf.mxu0
    %v154 = vadd.f32 %v56, %v153
    %155 = vmatmul.f32.gmra.mxu0 %v92
    %v156 = vpop.f32.mrf.mxu0
    %v157 = vadd.f32 %v56, %v156
    %158 = vmatmul.f32.gmra.mxu0 %v95
    %v159 = vpop.f32.mrf.mxu0
    %v160 = vadd.f32 %v56, %v159
    %161 = vmatmul.f32.gmra.mxu0 %v98
    %v162 = vpop.f32.mrf.mxu0
    %v163 = vadd.f32 %v56, %v162
    %164 = vmatmul.f32.gmra.mxu0 %v101
    %v165 = vpop.f32.mrf.mxu0
    %v166 = vadd.f32 %v56, %v165
    %167 = vmatmul.f32.gmra.mxu0 %v104
    %v168 = vpop.f32.mrf.mxu0
    %v169 = vadd.f32 %v56, %v168
    %170 = vdwg.mxu0
    %vm171 = vcmp.ge.f32.partialorder %v124, 0.0
    %vm172 = vcmp.ge.f32.partialorder %v127, 0.0
    %vm173 = vcmp.ge.f32.partialorder %v130, 0.0
    %vm174 = vcmp.ge.f32.partialorder %v133, 0.0
    %vm175 = vcmp.ge.f32.partialorder %v136, 0.0
    %vm176 = vcmp.ge.f32.partialorder %v139, 0.0
    %vm177 = vcmp.ge.f32.partialorder %v142, 0.0
    %vm178 = vcmp.ge.f32.partialorder %v145, 0.0
    %vm179 = vcmp.ge.f32.partialorder %v148, 0.0
    %vm180 = vcmp.ge.f32.partialorder %v151, 0.0
    %vm181 = vcmp.ge.f32.partialorder %v154, 0.0
    %vm182 = vcmp.ge.f32.partialorder %v157, 0.0
    %vm183 = vcmp.ge.f32.partialorder %v160, 0.0
    %vm184 = vcmp.ge.f32.partialorder %v163, 0.0
    %vm185 = vcmp.ge.f32.partialorder %v166, 0.0
    %vm186 = vcmp.ge.f32.partialorder %v169, 0.0
    %v187 = vmul.f32 %v124, 0.2
    %v188 = vmul.f32 %v127, 0.2
    %v189 = vmul.f32 %v130, 0.2
    %v190 = vmul.f32 %v133, 0.2
    %v191 = vmul.f32 %v136, 0.2
    %v192 = vmul.f32 %v139, 0.2
    %v193 = vmul.f32 %v142, 0.2
    %v194 = vmul.f32 %v145, 0.2
    %v195 = vmul.f32 %v148, 0.2
    %v196 = vmul.f32 %v151, 0.2
    %v197 = vmul.f32 %v154, 0.2
    %v198 = vmul.f32 %v157, 0.2
    %v199 = vmul.f32 %v160, 0.2
    %v200 = vmul.f32 %v163, 0.2
    %v201 = vmul.f32 %v166, 0.2
    %v202 = vmul.f32 %v169, 0.2
    %v203 = vsel %vm171, %v124, %v187
    %v204 = vsel %vm172, %v127, %v188
    %v205 = vsel %vm173, %v130, %v189
    %v206 = vsel %vm174, %v133, %v190
    %v207 = vsel %vm175, %v136, %v191
    %v208 = vsel %vm176, %v139, %v192
    %v209 = vsel %vm177, %v142, %v193
    %v210 = vsel %vm178, %v145, %v194
    %v211 = vsel %vm179, %v148, %v195
    %v212 = vsel %vm180, %v151, %v196
    %v213 = vsel %vm181, %v154, %v197
    %v214 = vsel %vm182, %v157, %v198
    %v215 = vsel %vm183, %v160, %v199
    %v216 = vsel %vm184, %v163, %v200
    %v217 = vsel %vm185, %v166, %v201
    %v218 = vsel %vm186, %v169, %v202
    %v219 = vld [vmem:[%s2] sm:$0xff]
    %v220 = vld [vmem:[%s2 + $0x8] sm:$0xff]
    %v221 = vld [vmem:[%s2 + $0x10] sm:$0xff]
    %v222 = vld [vmem:[%s2 + $0x18] sm:$0xff]
    %v223 = vld [vmem:[%s2 + $0x20] sm:$0xff]
    %v224 = vld [vmem:[%s2 + $0x28] sm:$0xff]
    %v225 = vld [vmem:[%s2 + $0x30] sm:$0xff]
    %v226 = vld [vmem:[%s2 + $0x38] sm:$0xff]
    %v227 = vld [vmem:[%s2 + $0x40] sm:$0xff]
    %v228 = vld [vmem:[%s2 + $0x48] sm:$0xff]
    %v229 = vld [vmem:[%s2 + $0x50] sm:$0xff]
    %v230 = vld [vmem:[%s2 + $0x58] sm:$0xff]
    %v231 = vld [vmem:[%s2 + $0x60] sm:$0xff]
    %v232 = vld [vmem:[%s2 + $0x68] sm:$0xff]
    %v233 = vld [vmem:[%s2 + $0x70] sm:$0xff]
    %v234 = vld [vmem:[%s2 + $0x78] sm:$0xff]
    %v235 = vperm.slane %v35, 1
    %236 = vmatpush.msra.mxu0 %v234
    %237 = vmatpush.msra.mxu0 %v233
    %238 = vmatpush.msra.mxu0 %v232
    %239 = vmatpush.msra.mxu0 %v231
    %240 = vmatpush.msra.mxu0 %v230
    %241 = vmatpush.msra.mxu0 %v229
    %242 = vmatpush.msra.mxu0 %v228
    %243 = vmatpush.msra.mxu0 %v227
    %244 = vmatpush.msra.mxu0 %v226
    %245 = vmatpush.msra.mxu0 %v225
    %246 = vmatpush.msra.mxu0 %v224
    %247 = vmatpush.msra.mxu0 %v223
    %248 = vmatpush.msra.mxu0 %v222
    %249 = vmatpush.msra.mxu0 %v221
    %250 = vmatpush.msra.mxu0 %v220
    %251 = vmatpush.msra.mxu0 %v219
    %252 = vmatmul.f32.gmra.mxu0 %v203
    %v253 = vpop.f32.mrf.mxu0
    %v254 = vadd.f32 %v235, %v253
    %255 = vmatmul.f32.gmra.mxu0 %v204
    %v256 = vpop.f32.mrf.mxu0
    %v257 = vadd.f32 %v235, %v256
    %258 = vmatmul.f32.gmra.mxu0 %v205
    %v259 = vpop.f32.mrf.mxu0
    %v260 = vadd.f32 %v235, %v259
    %261 = vmatmul.f32.gmra.mxu0 %v206
    %v262 = vpop.f32.mrf.mxu0
    %v263 = vadd.f32 %v235, %v262
    %264 = vmatmul.f32.gmra.mxu0 %v207
    %v265 = vpop.f32.mrf.mxu0
    %v266 = vadd.f32 %v235, %v265
    %267 = vmatmul.f32.gmra.mxu0 %v208
    %v268 = vpop.f32.mrf.mxu0
    %v269 = vadd.f32 %v235, %v268
    %270 = vmatmul.f32.gmra.mxu0 %v209
    %v271 = vpop.f32.mrf.mxu0
    %v272 = vadd.f32 %v235, %v271
    %273 = vmatmul.f32.gmra.mxu0 %v210
    %v274 = vpop.f32.mrf.mxu0
    %v275 = vadd.f32 %v235, %v274
    %276 = vmatmul.f32.gmra.mxu0 %v211
    %v277 = vpop.f32.mrf.mxu0
    %v278 = vadd.f32 %v235, %v277
    %279 = vmatmul.f32.gmra.mxu0 %v212
    %v280 = vpop.f32.mrf.mxu0
    %v281 = vadd.f32 %v235, %v280
    %282 = vmatmul.f32.gmra.mxu0 %v213
    %v283 = vpop.f32.mrf.mxu0
    %v284 = vadd.f32 %v235, %v283
    %285 = vmatmul.f32.gmra.mxu0 %v214
    %v286 = vpop.f32.mrf.mxu0
    %v287 = vadd.f32 %v235, %v286
    %288 = vmatmul.f32.gmra.mxu0 %v215
    %v289 = vpop.f32.mrf.mxu0
    %v290 = vadd.f32 %v235, %v289
    %291 = vmatmul.f32.gmra.mxu0 %v216
    %v292 = vpop.f32.mrf.mxu0
    %v293 = vadd.f32 %v235, %v292
    %294 = vmatmul.f32.gmra.mxu0 %v217
    %v295 = vpop.f32.mrf.mxu0
    %v296 = vadd.f32 %v235, %v295
    %297 = vmatmul.f32.gmra.mxu0 %v218
    %v298 = vpop.f32.mrf.mxu0
    %v299 = vadd.f32 %v235, %v298
    %300 = vdwg.mxu0
    %vm301 = vcmp.ge.f32.partialorder %v254, 0.0
    %vm302 = vcmp.ge.f32.partialorder %v257, 0.0
    %vm303 = vcmp.ge.f32.partialorder %v260, 0.0
    %vm304 = vcmp.ge.f32.partialorder %v263, 0.0
    %vm305 = vcmp.ge.f32.partialorder %v266, 0.0
    %vm306 = vcmp.ge.f32.partialorder %v269, 0.0
    %vm307 = vcmp.ge.f32.partialorder %v272, 0.0
    %vm308 = vcmp.ge.f32.partialorder %v275, 0.0
    %vm309 = vcmp.ge.f32.partialorder %v278, 0.0
    %vm310 = vcmp.ge.f32.partialorder %v281, 0.0
    %vm311 = vcmp.ge.f32.partialorder %v284, 0.0
    %vm312 = vcmp.ge.f32.partialorder %v287, 0.0
    %vm313 = vcmp.ge.f32.partialorder %v290, 0.0
    %vm314 = vcmp.ge.f32.partialorder %v293, 0.0
    %vm315 = vcmp.ge.f32.partialorder %v296, 0.0
    %vm316 = vcmp.ge.f32.partialorder %v299, 0.0
    %v317 = vmul.f32 %v254, 0.2
    %v318 = vmul.f32 %v257, 0.2
    %v319 = vmul.f32 %v260, 0.2
    %v320 = vmul.f32 %v263, 0.2
    %v321 = vmul.f32 %v266, 0.2
    %v322 = vmul.f32 %v269, 0.2
    %v323 = vmul.f32 %v272, 0.2
    %v324 = vmul.f32 %v275, 0.2
    %v325 = vmul.f32 %v278, 0.2
    %v326 = vmul.f32 %v281, 0.2
    %v327 = vmul.f32 %v284, 0.2
    %v328 = vmul.f32 %v287, 0.2
    %v329 = vmul.f32 %v290, 0.2
    %v330 = vmul.f32 %v293, 0.2
    %v331 = vmul.f32 %v296, 0.2
    %v332 = vmul.f32 %v299, 0.2
    %v333 = vsel %vm301, %v254, %v317
    %v334 = vsel %vm302, %v257, %v318
    %v335 = vsel %vm303, %v260, %v319
    %v336 = vsel %vm304, %v263, %v320
    %v337 = vsel %vm305, %v266, %v321
    %v338 = vsel %vm306, %v269, %v322
    %v339 = vsel %vm307, %v272, %v323
    %v340 = vsel %vm308, %v275, %v324
    %v341 = vsel %vm309, %v278, %v325
    %v342 = vsel %vm310, %v281, %v326
    %v343 = vsel %vm311, %v284, %v327
    %v344 = vsel %vm312, %v287, %v328
    %v345 = vsel %vm313, %v290, %v329
    %v346 = vsel %vm314, %v293, %v330
    %v347 = vsel %vm315, %v296, %v331
    %v348 = vsel %vm316, %v299, %v332
    %v349 = vld [vmem:[#allocation2] sm:$0xff]
    %350 = vmatpush.xpose.msra.mxu0 %v348
    %351 = vmatpush.xpose.msra.mxu0 %v347
    %352 = vmatpush.xpose.msra.mxu0 %v346
    %353 = vmatpush.xpose.msra.mxu0 %v345
    %354 = vmatpush.xpose.msra.mxu0 %v344
    %355 = vmatpush.xpose.msra.mxu0 %v343
    %356 = vmatpush.xpose.msra.mxu0 %v342
    %357 = vmatpush.xpose.msra.mxu0 %v341
    %358 = vmatpush.xpose.msra.mxu0 %v340
    %359 = vmatpush.xpose.msra.mxu0 %v339
    %360 = vmatpush.xpose.msra.mxu0 %v338
    %361 = vmatpush.xpose.msra.mxu0 %v337
    %362 = vmatpush.xpose.msra.mxu0 %v336
    %363 = vmatpush.xpose.msra.mxu0 %v335
    %364 = vmatpush.xpose.msra.mxu0 %v334
    %365 = vmatpush.xpose.msra.mxu0 %v333
    %366 = vmatmul.f32.gmra.mxu0 %v349
    %v367 = vpop.f32.mrf.mxu0
    %v368 = vadd.f32 0.0, %v367
    %369 = vdwg.mxu0
    %v370 = vsub.f32 0.0, %v368
    %v371 = vmul.f32 %v370, 1.442695
    %v372 = vpow.pop %v371
    %v373 = vadd.f32 %v372, 1.0
    %v374 = vrcp.pop %v373
    %v375 = vmul.f32 %v373, %v374
    %v376 = vsub.f32 1.0, %v375
    %v377 = vmul.f32 %v374, %v376
    %v378 = vadd.f32 %v374, %v377
    %vm379 = vweird.f32 %v373
    %vm380 = vweird.f32 %v374
    %vm381 = vmor %vm379, %vm380
    %v382 = vsel %vm381, %v374, %v378
    %v383 = vand.u32 2147483647, %v373
    %vm384 = vcmp.eq.f32.partialorder %v383, 8.507059e+37
    %v385 = vand.u32 %v373, 2147483648
    %v386 = vor.u32 1.1754944e-38, %v385
    %v387 = vsel %vm384, %v386, %v382
    %v388 = vmul.f32 1.0, %v387
    %389 = vst [vmem:[#allocation5] sm:$0xff] %v388
    // Predicated region
    $region26: #{tpu_custom_call.1} parent=1 // pred_check
      _
    $region27: #{tpu_custom_call.1} parent=1 // pred_check_branch
      %391 = sbr.rel (0) target = $region29
    $region28: #{tpu_custom_call.1} parent=1 // pred_region
      %393 = vsyncadd [#allocation4], 0
      %s395 = sshll.u32 [#allocation5], 4
      %s396 = int_to_ptr.vmem [resolvable:$true] %s395
      %s397 = sshll.u32 %s5, 4
      %s398 = int_to_ptr.hbm [resolvable:$true] %s397
      %400 = dma.vmem_to_hbm [thread:$0]  %s396, 128, %s398, [#allocation4]
    $region29: #{tpu_custom_call.1} parent=1 // pred_fallthru
      _
    // Predicated region
    $region30: #{tpu_custom_call.1} parent=1 // pred_check
      _
    $region31: #{tpu_custom_call.1} parent=1 // pred_check_branch
      %402 = sbr.rel (0) target = $region33
    $region32: #{tpu_custom_call.1} parent=1 // pred_region
      %404 = dma.done [#allocation4], 128
    $region33: #{tpu_custom_call.1} parent=1 // pred_fallthru
      _
    %405 = vsyncpa [#allocation3], 1
    %406 = vsyncpa [#allocation4], 1

</llo_original>
